<compile_context>
chip_gen: v6e
topology: v6e:2x2x1
jax: 0.10.0
libtpu: 0.0.40
codegen_flags: <defaults>
</compile_context>

<pallas_src>
import math
import functools

import jax
import jax.numpy as jnp
from jax import lax
from jax.experimental import pallas as pl
from jax.experimental.pallas import tpu as pltpu

_EPS = 1e-12            # torch.nn.functional.normalize default eps (clamp on the norm)
_EPS_SQ = _EPS * _EPS   # equivalent clamp on the sum of squares


def _arcfc_kernel(x_ref, w_ref, label_ref, o_ref, *,
                  s, cos_m, sin_m, th, mm, easy_margin, tn):
    # x_ref:     (tm, K)  raw input rows (native dtype)
    # w_ref:     (tn, K)  raw weight rows of this column tile (native dtype)
    # label_ref: (tm, 1)  int32 class ids (global column index; -1 for pad rows)
    # o_ref:     (tm, tn) f32
    xf = x_ref[...].astype(jnp.float32)
    wf = w_ref[...].astype(jnp.float32)

    # Inverse L2 norms from the resident tiles (f32). rsqrt(max(ss, eps^2)) ==
    # 1 / max(||v||, eps), matching F.normalize's clamp.  Zero-padded rows give
    # ss=0 -> inv=1e12, but 0 * 1e12 = 0, so padded rows/cols stay at cosine 0.
    inv_x = lax.rsqrt(jnp.maximum(jnp.sum(xf * xf, axis=1, keepdims=True), _EPS_SQ))
    inv_w = lax.rsqrt(jnp.maximum(jnp.sum(wf * wf, axis=1, keepdims=True), _EPS_SQ))

    # Fold the norms into the operands (cheap tm*K / tn*K VPU mults) and run the
    # contraction in bf16 on the MXU with f32 accumulation.
    xb = (xf * inv_x).astype(jnp.bfloat16)
    wb = (wf * inv_w).astype(jnp.bfloat16)
    cosine = lax.dot_general(
        xb, wb,
        dimension_numbers=(((1,), (1,)), ((), ())),
        preferred_element_type=jnp.float32,
    )

    # phi is only consumed where col == label (<=1 element per row), so extract
    # cos(theta_label) with a masked lane reduction and do the margin math on a
    # (tm, 1) vector instead of the full (tm, tn) tile.
    j = pl.program_id(1)
    col = lax.broadcasted_iota(jnp.int32, cosine.shape, dimension=1) + j * tn
    is_label = col == label_ref[...]          # all-False if the label is in a
                                              # different column tile / pad row
    c = jnp.sum(jnp.where(is_label, cosine, 0.0), axis=1, keepdims=True)  # (tm,1)
    sine = jnp.sqrt(jnp.clip(1.0 - c * c, 0.0, 1.0))
    phi = c * cos_m - sine * sin_m
    if easy_margin:
        phi = jnp.where(c > 0.0, phi, c)
    else:
        phi = jnp.where(c > th, phi, c - mm)

    # one_hot*phi + (1-one_hot)*cosine collapses to a single select; rows whose
    # label lives elsewhere (or padded rows with label=-1) never pick phi.
    o_ref[...] = (jnp.where(is_label, phi, cosine) * s).astype(o_ref.dtype)


def _round_up(v, mult):
    return ((v + mult - 1) // mult) * mult


def _vmem_capacity_bytes():
    try:
        return int(pltpu.get_tpu_info().vmem_capacity_bytes)
    except Exception:
        return 64 * 1024 * 1024   # conservative: assume v7x (64 MiB / TensorCore)


def arc_fc(x, weight, label, *, s=30.0, m=0.5, easy_margin=False,
           tm=None, tn=None):
    """ArcFace margin head.

    x:      (B, in_features) float
    weight: (out_features, in_features) float
    label:  (B,) integer class ids
    returns (B, out_features) float32
    """
    B, K = x.shape
    N, K_w = weight.shape
    assert K == K_w, "in_features mismatch"

    vmem_cap = _vmem_capacity_bytes()
    # v7x (64 MiB VMEM): scoped limit 48 MiB; v5e/v6e (128 MiB): 96 MiB.
    vmem_limit = min(96 * 2**20, (vmem_cap * 3) // 4)
    tile_budget = max(vmem_limit - 8 * 2**20, 16 * 2**20)
    tn_cap = 2048 if vmem_cap >= 100 * 2**20 else 1024

    # --- out_features tiling: lane-dense, with padding kept <=127 columns in
    # the common case (tn picked as a divisor of round_up(N, 128)).
    Np = _round_up(N, 128)
    if tn is None:
        if Np <= tn_cap:
            tn = Np
        else:
            tn = 0
            for cand in range(tn_cap, 255, -128):
                if Np % cand == 0:
                    tn = cand
                    break
            if tn == 0:                 # no nice divisor: accept <= tn-1 pad cols
                tn = min(512, tn_cap)
                Np = _round_up(N, tn)
    else:
        Np = _round_up(N, tn)

    # --- batch tiling: large tm so W is streamed from HBM as few times as
    # possible (i-outer / j-inner keeps the x tile resident across j).
    if tm is None:
        tm = min(512, _round_up(B, 8))

    bytes_x = jnp.dtype(x.dtype).itemsize
    bytes_w = jnp.dtype(weight.dtype).itemsize

    def est_vmem(tm_, tn_):
        # double-buffered input/output tiles (+ label tile)
        return 2 * (tm_ * K * bytes_x + tn_ * K * bytes_w + tm_ * tn_ * 4 + tm_ * 4)

    while est_vmem(tm, tn) > tile_budget and tm > 64:
        tm = max(64, _round_up(tm // 2, 8))
    while est_vmem(tm, tn) > tile_budget and tn > 256 and tn % 256 == 0:
        tn //= 2

    Bp = _round_up(B, tm)

    # Only pad; never change dtype (the kernel casts tiles to bf16 itself).
    xp = x if Bp == B else jnp.pad(x, ((0, Bp - B), (0, 0)))
    wp = weight if Np == N else jnp.pad(weight, ((0, Np - N), (0, 0)))
    lp = label.astype(jnp.int32).reshape(-1, 1)
    if Bp != B:
        lp = jnp.pad(lp, ((0, Bp - B), (0, 0)), constant_values=-1)

    kernel = functools.partial(
        _arcfc_kernel,
        s=float(s),
        cos_m=math.cos(m),
        sin_m=math.sin(m),
        th=math.cos(math.pi - m),
        mm=math.sin(math.pi - m) * m,
        easy_margin=bool(easy_margin),
        tn=tn,
    )

    grid = (Bp // tm, Np // tn)   # i outer (batch), j inner (classes)
    # Note: if the weight DMA is still exposed for very large N, the weight
    # BlockSpec can additionally use pipeline_mode=pl.Buffered(3).
    out = pl.pallas_call(
        kernel,
        out_shape=jax.ShapeDtypeStruct((Bp, Np), jnp.float32),
        grid=grid,
        in_specs=[
            pl.BlockSpec((tm, K), lambda i, j: (i, 0)),   # x row tile (resident per i)
            pl.BlockSpec((tn, K), lambda i, j: (j, 0)),   # weight row tile (streamed)
            pl.BlockSpec((tm, 1), lambda i, j: (i, 0)),   # labels
        ],
        out_specs=pl.BlockSpec((tm, tn), lambda i, j: (i, j)),
        compiler_params=pltpu.CompilerParams(
            dimension_semantics=("parallel", "parallel"),
            vmem_limit_bytes=int(vmem_limit),
        ),
    )(xp, wp, lp)

    return out[:B, :N]


def _xavier_uniform(key, shape, dtype=jnp.float32):
    # torch.nn.init.xavier_uniform_ for a 2D (out, in) weight
    fan_out, fan_in = shape
    limit = math.sqrt(6.0 / (fan_in + fan_out))
    return jax.random.uniform(key, shape, dtype=dtype, minval=-limit, maxval=limit)


if __name__ == "__main__":
    key = jax.random.PRNGKey(0)
    k_x, k_w, k_l = jax.random.split(key, 3)

    B = 8
    in_features = 32
    out_features = 16
    s_, m_ = 30.0, 0.5

    x = jax.random.normal(k_x, (B, in_features), dtype=jnp.float32)
    weight = _xavier_uniform(k_w, (out_features, in_features))
    label = jax.random.randint(k_l, (B,), 0, out_features, dtype=jnp.int32)

    out = jax.block_until_ready(arc_fc(x, weight, label, s=s_, m=m_, easy_margin=False))

    # ---------------- references ----------------
    cos_m, sin_m = math.cos(m_), math.sin(m_)
    th, mm = math.cos(math.pi - m_), math.sin(math.pi - m_) * m_

    def margin_head(cosine):
        sine = jnp.sqrt(jnp.clip(1.0 - cosine ** 2, 0.0, 1.0))
        phi = cosine * cos_m - sine * sin_m
        phi = jnp.where(cosine > th, phi, cosine - mm)
        one_hot = jax.nn.one_hot(label, out_features, dtype=jnp.float32)
        return (one_hot * phi + (1.0 - one_hot) * cosine) * s_

    eps = 1e-12
    # (a) f32 reference, faithful to the PyTorch module.
    xn = x / jnp.maximum(jnp.linalg.norm(x, axis=1, keepdims=True), eps)
    wn = weight / jnp.maximum(jnp.linalg.norm(weight, axis=1, keepdims=True), eps)
    ref_f32 = margin_head(xn @ wn.T)

    # (b) reference using the same bf16 rounding the kernel feeds the MXU.
    inv_x = lax.rsqrt(jnp.maximum(jnp.sum(x * x, axis=1, keepdims=True), eps * eps))
    inv_w = lax.rsqrt(jnp.maximum(jnp.sum(weight * weight, axis=1, keepdims=True), eps * eps))
    cos_b = jnp.dot((x * inv_x).astype(jnp.bfloat16),
                    (weight * inv_w).astype(jnp.bfloat16).T,
                    preferred_element_type=jnp.float32)
    ref_b = margin_head(cos_b)

    assert out.shape == ref_f32.shape
    assert jnp.allclose(out, ref_b, atol=5e-3, rtol=5e-3), "mismatch vs bf16-consistent reference"
    # bf16 MXU inputs give ~1e-3 relative error on cosine (times s=30): loose sanity check.
    assert jnp.allclose(out, ref_f32, atol=5e-1, rtol=2e-2), "mismatch vs f32 reference"
    print("KERNEL_OK")
</pallas_src>

<mosaic_0001>
module attributes {stable_mosaic.version = 11 : i64} {
  func.func @_arcfc_kernel(%arg0: i32, %arg1: i32, %arg2: memref<8x32xf32, #tpu.memory_space<vmem>>, %arg3: memref<128x32xf32, #tpu.memory_space<vmem>>, %arg4: memref<8x1xi32, #tpu.memory_space<vmem>>, %arg5: memref<8x128xf32, #tpu.memory_space<vmem>>) attributes {dimension_semantics = [#tpu.dimension_semantics<parallel>, #tpu.dimension_semantics<parallel>], iteration_bounds = array<i64: 1, 1>, scalar_prefetch = 0 : i64, scratch_operands = 0 : i64, tpu.core_type = #tpu.core_type<tc>, window_params = [{transform_indices = @transform_0, window_bounds = array<i64: 8, 32>}, {transform_indices = @transform_1, window_bounds = array<i64: 128, 32>}, {transform_indices = @transform_2, window_bounds = array<i64: 8, 1>}, {transform_indices = @transform_3, window_bounds = array<i64: 8, 128>}]} {
    %c0 = arith.constant 0 : index
    %c0_0 = arith.constant 0 : index
    %0 = vector.load %arg2[%c0, %c0_0] : memref<8x32xf32, #tpu.memory_space<vmem>>, vector<8x32xf32>
    %c0_1 = arith.constant 0 : index
    %c0_2 = arith.constant 0 : index
    %1 = vector.load %arg3[%c0_1, %c0_2] : memref<128x32xf32, #tpu.memory_space<vmem>>, vector<128x32xf32>
    %2 = arith.mulf %0, %0 : vector<8x32xf32>
    %cst = arith.constant dense<0.000000e+00> : vector<8xf32>
    %3 = vector.multi_reduction <add>, %2, %cst [1] : vector<8x32xf32> to vector<8xf32>
    %4 = vector.shape_cast %3 : vector<8xf32> to vector<8x1xf32>
    %cst_3 = arith.constant 1.000000e-24 : f32
    %5 = vector.broadcast %cst_3 : f32 to vector<8x1xf32>
    %6 = arith.maximumf %4, %5 : vector<8x1xf32>
    %7 = math.rsqrt %6 : vector<8x1xf32>
    %8 = arith.mulf %1, %1 : vector<128x32xf32>
    %cst_4 = arith.constant dense<0.000000e+00> : vector<128xf32>
    %9 = vector.multi_reduction <add>, %8, %cst_4 [1] : vector<128x32xf32> to vector<128xf32>
    %10 = vector.shape_cast %9 : vector<128xf32> to vector<128x1xf32>
    %cst_5 = arith.constant 1.000000e-24 : f32
    %11 = vector.broadcast %cst_5 : f32 to vector<128x1xf32>
    %12 = arith.maximumf %10, %11 : vector<128x1xf32>
    %13 = math.rsqrt %12 : vector<128x1xf32>
    %14 = vector.broadcast %7 : vector<8x1xf32> to vector<8x32xf32>
    %15 = arith.mulf %0, %14 : vector<8x32xf32>
    %16 = arith.truncf %15 : vector<8x32xf32> to vector<8x32xbf16>
    %17 = vector.broadcast %13 : vector<128x1xf32> to vector<128x32xf32>
    %18 = arith.mulf %1, %17 : vector<128x32xf32>
    %19 = arith.truncf %18 : vector<128x32xf32> to vector<128x32xbf16>
    %cst_6 = arith.constant dense<0.000000e+00> : vector<8x128xf32>
    %20 = tpu.matmul %16, %19, %cst_6 {dimension_numbers = #tpu.dot_dimension_numbers<[1], [1], [0], [0], [0, 0, 1, 0], [], []>} : vector<8x32xbf16>, vector<128x32xbf16>, vector<8x128xf32> -> vector<8x128xf32>
    %21 = tpu.iota {dimensions = array<i32: 1>} : vector<8x128xi32>
    %c128_i32 = arith.constant 128 : i32
    %22 = arith.muli %arg1, %c128_i32 : i32
    %23 = vector.broadcast %22 : i32 to vector<8x128xi32>
    %24 = arith.addi %21, %23 : vector<8x128xi32>
    %c0_7 = arith.constant 0 : index
    %c0_8 = arith.constant 0 : index
    %25 = vector.load %arg4[%c0_7, %c0_8] : memref<8x1xi32, #tpu.memory_space<vmem>>, vector<8x1xi32>
    %26 = vector.broadcast %25 : vector<8x1xi32> to vector<8x128xi32>
    %27 = arith.cmpi eq, %24, %26 : vector<8x128xi32>
    %cst_9 = arith.constant 0.000000e+00 : f32
    %28 = vector.broadcast %cst_9 : f32 to vector<8x128xf32>
    %29 = arith.select %27, %20, %28 : vector<8x128xi1>, vector<8x128xf32>
    %cst_10 = arith.constant dense<0.000000e+00> : vector<8xf32>
    %30 = vector.multi_reduction <add>, %29, %cst_10 [1] : vector<8x128xf32> to vector<8xf32>
    %31 = vector.shape_cast %30 : vector<8xf32> to vector<8x1xf32>
    %32 = arith.mulf %31, %31 : vector<8x1xf32>
    %cst_11 = arith.constant 1.000000e+00 : f32
    %33 = vector.broadcast %cst_11 : f32 to vector<8x1xf32>
    %34 = arith.subf %33, %32 : vector<8x1xf32>
    %cst_12 = arith.constant 0.000000e+00 : f32
    %cst_13 = arith.constant 1.000000e+00 : f32
    %35 = vector.broadcast %cst_12 : f32 to vector<8x1xf32>
    %36 = arith.maximumf %35, %34 : vector<8x1xf32>
    %37 = vector.broadcast %cst_13 : f32 to vector<8x1xf32>
    %38 = arith.minimumf %37, %36 : vector<8x1xf32>
    %39 = math.sqrt %38 : vector<8x1xf32>
    %cst_14 = arith.constant 0.87758255 : f32
    %40 = vector.broadcast %cst_14 : f32 to vector<8x1xf32>
    %41 = arith.mulf %31, %40 : vector<8x1xf32>
    %cst_15 = arith.constant 0.47942555 : f32
    %42 = vector.broadcast %cst_15 : f32 to vector<8x1xf32>
    %43 = arith.mulf %39, %42 : vector<8x1xf32>
    %44 = arith.subf %41, %43 : vector<8x1xf32>
    %cst_16 = arith.constant -0.87758255 : f32
    %45 = vector.broadcast %cst_16 : f32 to vector<8x1xf32>
    %46 = arith.cmpf ogt, %31, %45 : vector<8x1xf32>
    %cst_17 = arith.constant 0.239712775 : f32
    %47 = vector.broadcast %cst_17 : f32 to vector<8x1xf32>
    %48 = arith.subf %31, %47 : vector<8x1xf32>
    %49 = arith.select %46, %44, %48 : vector<8x1xi1>, vector<8x1xf32>
    %50 = vector.shape_cast %49 : vector<8x1xf32> to vector<8x1xf32>
    %51 = vector.broadcast %50 : vector<8x1xf32> to vector<8x128xf32>
    %52 = arith.select %27, %51, %20 : vector<8x128xi1>, vector<8x128xf32>
    %cst_18 = arith.constant 3.000000e+01 : f32
    %53 = vector.broadcast %cst_18 : f32 to vector<8x128xf32>
    %54 = arith.mulf %52, %53 : vector<8x128xf32>
    %c0_19 = arith.constant 0 : index
    %c0_20 = arith.constant 0 : index
    %55 = vector.load %arg5[%c0_19, %c0_20] : memref<8x128xf32, #tpu.memory_space<vmem>>, vector<8x128xf32>
    tpu.vector_store %arg5[%c0_19, %c0_20], %54 {strides = array<i32>} : memref<8x128xf32, #tpu.memory_space<vmem>>, vector<8x128xf32>,
    return
  }
  func.func @transform_0(%arg0: i32, %arg1: i32) -> (i32, i32) {
    %c0_i32 = arith.constant 0 : i32
    %c0_i32_0 = arith.constant 0 : i32
    return %arg0, %c0_i32 : i32, i32
  }
  func.func @transform_1(%arg0: i32, %arg1: i32) -> (i32, i32) {
    %c0_i32 = arith.constant 0 : i32
    %c0_i32_0 = arith.constant 0 : i32
    return %arg1, %c0_i32 : i32, i32
  }
  func.func @transform_2(%arg0: i32, %arg1: i32) -> (i32, i32) {
    %c0_i32 = arith.constant 0 : i32
    %c0_i32_0 = arith.constant 0 : i32
    return %arg0, %c0_i32 : i32, i32
  }
  func.func @transform_3(%arg0: i32, %arg1: i32) -> (i32, i32) {
    %c0_i32 = arith.constant 0 : i32
    return %arg0, %arg1 : i32, i32
  }
}

</mosaic_0001>

<llo_original>
// kernel: tpu_custom_call.1
$region0: #{tpu_custom_call.1}
  #allocation0 [shape = 'u32[]', space=smem, size = 0x4, offset = 0x4, fixed_abs, tag = 'smem constant byte address 0x4 - core index']
  #allocation1 [shape = 'u32[144,128]{1,0:T(1,128)}', space=vmem, size = 0x12000, scoped, tag = 'internal scratch']
  %s0 = inlined_call_operand.vmem [shape: f32[8,32], index: 0, kind: input, shape index: {}]
  %s1 = inlined_call_operand.vmem [shape: f32[128,32], index: 1, kind: input, shape index: {}]
  %s2 = inlined_call_operand.vmem [shape: s32[8,1], index: 2, kind: input, shape index: {}]
  %s3 = inlined_call_operand.hbm [shape: f32[8,128], index: 3, kind: output, shape index: {}]
  %s4 = sld [smem:[#allocation0]]
  $region22: #{tpu_custom_call.1} parent=0
    _
  %s6 = ssub.s32 1, %s4
  %s7 = scalar_select 0, %s6, %s4
  $region1: #{tpu_custom_call.1} parent=0
    #allocation2 [shape = 'u8[4096]{0}', space=vmem, size = 0x1000, scoped, tag = 'output window, operand 0, single buffered']
    #allocation3 [shape = 's32[1]{0}', space=sflag, size = 0x4, scoped, tag = 'scoped memory for tpu_custom_call.1']
    %8 = vsyncpa [#allocation3], 0
    // Predicated region
    $region2: #{tpu_custom_call.1} parent=1 // pred_check
      _
    $region3: #{tpu_custom_call.1} parent=1 // pred_check_branch
      %10 = sbr.rel (0) target = $region5
    $region4: #{tpu_custom_call.1} parent=1 // pred_region
      _
    $region5: #{tpu_custom_call.1} parent=1 // pred_fallthru
      _
    // Predicated region
    $region6: #{tpu_custom_call.1} parent=1 // pred_check
      _
    $region7: #{tpu_custom_call.1} parent=1 // pred_check_branch
      %12 = sbr.rel (0) target = $region9
    $region8: #{tpu_custom_call.1} parent=1 // pred_region
      _
    $region9: #{tpu_custom_call.1} parent=1 // pred_fallthru
      _
    // Predicated region
    $region10: #{tpu_custom_call.1} parent=1 // pred_check
      _
    $region11: #{tpu_custom_call.1} parent=1 // pred_check_branch
      %14 = sbr.rel (0) target = $region13
    $region12: #{tpu_custom_call.1} parent=1 // pred_region
      _
    $region13: #{tpu_custom_call.1} parent=1 // pred_fallthru
      _
    %v16 = vld [vmem:[%s0] sm:$0xff]
    %v17 = vld [vmem:[%s1] sm:$0xff]
    %v18 = vld [vmem:[%s1 + $0x8] sm:$0xff]
    %v19 = vld [vmem:[%s1 + $0x10] sm:$0xff]
    %v20 = vld [vmem:[%s1 + $0x18] sm:$0xff]
    %v21 = vld [vmem:[%s1 + $0x20] sm:$0xff]
    %v22 = vld [vmem:[%s1 + $0x28] sm:$0xff]
    %v23 = vld [vmem:[%s1 + $0x30] sm:$0xff]
    %v24 = vld [vmem:[%s1 + $0x38] sm:$0xff]
    %v25 = vld [vmem:[%s1 + $0x40] sm:$0xff]
    %v26 = vld [vmem:[%s1 + $0x48] sm:$0xff]
    %v27 = vld [vmem:[%s1 + $0x50] sm:$0xff]
    %v28 = vld [vmem:[%s1 + $0x58] sm:$0xff]
    %v29 = vld [vmem:[%s1 + $0x60] sm:$0xff]
    %v30 = vld [vmem:[%s1 + $0x68] sm:$0xff]
    %v31 = vld [vmem:[%s1 + $0x70] sm:$0xff]
    %v32 = vld [vmem:[%s1 + $0x78] sm:$0xff]
    %v33 = vmul.f32 %v16, %v16
    %vm34 = vcmask 261120
    %v35 = vsel %vm34, %v33, 0.0
    %36 = vadd.xlane.f32.xlu0 %v35
    %v37 = vpop.xlane.xlu0 %36
    %v38 = vmax.f32 %v37, 1e-24
    %v39 = vrsqrt.pop %v38
    %v40 = vmul.f32 %v17, %v17
    %v41 = vmul.f32 %v18, %v18
    %v42 = vmul.f32 %v19, %v19
    %v43 = vmul.f32 %v20, %v20
    %v44 = vmul.f32 %v21, %v21
    %v45 = vmul.f32 %v22, %v22
    %v46 = vmul.f32 %v23, %v23
    %v47 = vmul.f32 %v24, %v24
    %v48 = vmul.f32 %v25, %v25
    %v49 = vmul.f32 %v26, %v26
    %v50 = vmul.f32 %v27, %v27
    %v51 = vmul.f32 %v28, %v28
    %v52 = vmul.f32 %v29, %v29
    %v53 = vmul.f32 %v30, %v30
    %v54 = vmul.f32 %v31, %v31
    %v55 = vmul.f32 %v32, %v32
    %v56 = vsel %vm34, %v40, 0.0
    %57 = vadd.xlane.f32.xlu0 %v56
    %v58 = vpop.xlane.xlu0 %57
    %v59 = vsel %vm34, %v41, 0.0
    %60 = vadd.xlane.f32.xlu0 %v59
    %v61 = vpop.xlane.xlu0 %60
    %v62 = vsel %vm34, %v42, 0.0
    %63 = vadd.xlane.f32.xlu0 %v62
    %v64 = vpop.xlane.xlu0 %63
    %v65 = vsel %vm34, %v43, 0.0
    %66 = vadd.xlane.f32.xlu0 %v65
    %v67 = vpop.xlane.xlu0 %66
    %v68 = vsel %vm34, %v44, 0.0
    %69 = vadd.xlane.f32.xlu0 %v68
    %v70 = vpop.xlane.xlu0 %69
    %v71 = vsel %vm34, %v45, 0.0
    %72 = vadd.xlane.f32.xlu0 %v71
    %v73 = vpop.xlane.xlu0 %72
    %v74 = vsel %vm34, %v46, 0.0
    %75 = vadd.xlane.f32.xlu0 %v74
    %v76 = vpop.xlane.xlu0 %75
    %v77 = vsel %vm34, %v47, 0.0
    %78 = vadd.xlane.f32.xlu0 %v77
    %v79 = vpop.xlane.xlu0 %78
    %v80 = vsel %vm34, %v48, 0.0
    %81 = vadd.xlane.f32.xlu0 %v80
    %v82 = vpop.xlane.xlu0 %81
    %v83 = vsel %vm34, %v49, 0.0
    %84 = vadd.xlane.f32.xlu0 %v83
    %v85 = vpop.xlane.xlu0 %84
    %v86 = vsel %vm34, %v50, 0.0
    %87 = vadd.xlane.f32.xlu0 %v86
    %v88 = vpop.xlane.xlu0 %87
    %v89 = vsel %vm34, %v51, 0.0
    %90 = vadd.xlane.f32.xlu0 %v89
    %v91 = vpop.xlane.xlu0 %90
    %v92 = vsel %vm34, %v52, 0.0
    %93 = vadd.xlane.f32.xlu0 %v92
    %v94 = vpop.xlane.xlu0 %93
    %v95 = vsel %vm34, %v53, 0.0
    %96 = vadd.xlane.f32.xlu0 %v95
    %v97 = vpop.xlane.xlu0 %96
    %v98 = vsel %vm34, %v54, 0.0
    %99 = vadd.xlane.f32.xlu0 %v98
    %v100 = vpop.xlane.xlu0 %99
    %v101 = vsel %vm34, %v55, 0.0
    %102 = vadd.xlane.f32.xlu0 %v101
    %v103 = vpop.xlane.xlu0 %102
    %v104 = vmax.f32 %v58, 1e-24
    %v105 = vmax.f32 %v61, 1e-24
    %v106 = vmax.f32 %v64, 1e-24
    %v107 = vmax.f32 %v67, 1e-24
    %v108 = vmax.f32 %v70, 1e-24
    %v109 = vmax.f32 %v73, 1e-24
    %v110 = vmax.f32 %v76, 1e-24
    %v111 = vmax.f32 %v79, 1e-24
    %v112 = vmax.f32 %v82, 1e-24
    %v113 = vmax.f32 %v85, 1e-24
    %v114 = vmax.f32 %v88, 1e-24
    %v115 = vmax.f32 %v91, 1e-24
    %v116 = vmax.f32 %v94, 1e-24
    %v117 = vmax.f32 %v97, 1e-24
    %v118 = vmax.f32 %v100, 1e-24
    %v119 = vmax.f32 %v103, 1e-24
    %v120 = vrsqrt.pop %v104
    %v121 = vrsqrt.pop %v105
    %v122 = vrsqrt.pop %v106
    %v123 = vrsqrt.pop %v107
    %v124 = vrsqrt.pop %v108
    %v125 = vrsqrt.pop %v109
    %v126 = vrsqrt.pop %v110
    %v127 = vrsqrt.pop %v111
    %v128 = vrsqrt.pop %v112
    %v129 = vrsqrt.pop %v113
    %v130 = vrsqrt.pop %v114
    %v131 = vrsqrt.pop %v115
    %v132 = vrsqrt.pop %v116
    %v133 = vrsqrt.pop %v117
    %v134 = vrsqrt.pop %v118
    %v135 = vrsqrt.pop %v119
    %v136 = vmul.f32 %v16, %v39
    %v137 = vpack.c.bf16 %v136, %v136
    %v138 = vmul.f32 %v17, %v120
    %v139 = vmul.f32 %v18, %v121
    %v140 = vmul.f32 %v19, %v122
    %v141 = vmul.f32 %v20, %v123
    %v142 = vmul.f32 %v21, %v124
    %v143 = vmul.f32 %v22, %v125
    %v144 = vmul.f32 %v23, %v126
    %v145 = vmul.f32 %v24, %v127
    %v146 = vmul.f32 %v25, %v128
    %v147 = vmul.f32 %v26, %v129
    %v148 = vmul.f32 %v27, %v130
    %v149 = vmul.f32 %v28, %v131
    %v150 = vmul.f32 %v29, %v132
    %v151 = vmul.f32 %v30, %v133
    %v152 = vmul.f32 %v31, %v134
    %v153 = vmul.f32 %v32, %v135
    %v154 = vpack.c.bf16 %v139, %v138
    %v155 = vpack.c.bf16 %v141, %v140
    %v156 = vpack.c.bf16 %v143, %v142
    %v157 = vpack.c.bf16 %v145, %v144
    %v158 = vpack.c.bf16 %v147, %v146
    %v159 = vpack.c.bf16 %v149, %v148
    %v160 = vpack.c.bf16 %v151, %v150
    %v161 = vpack.c.bf16 %v153, %v152
    %v163 = vsel %vm34, %v137, 0
    %v166 = vsel %vm34, %v154, 0
    %v169 = vsel %vm34, %v155, 0
    %v172 = vsel %vm34, %v156, 0
    %v175 = vsel %vm34, %v157, 0
    %v178 = vsel %vm34, %v158, 0
    %v181 = vsel %vm34, %v159, 0
    %v184 = vsel %vm34, %v160, 0
    %v187 = vsel %vm34, %v161, 0
    %189 = vmatprep.subr.bf16.mxu0 0
    %190 = vmatpush1.bf16.xpose.msra.mxu0 %v187
    %191 = vmatprep.subr.bf16.mxu0 0
    %192 = vmatpush1.bf16.xpose.msra.mxu0 %v184
    %193 = vmatprep.subr.bf16.mxu0 0
    %194 = vmatpush1.bf16.xpose.msra.mxu0 %v181
    %195 = vmatprep.subr.bf16.mxu0 0
    %196 = vmatpush1.bf16.xpose.msra.mxu0 %v178
    %197 = vmatprep.subr.bf16.mxu0 0
    %198 = vmatpush1.bf16.xpose.msra.mxu0 %v175
    %199 = vmatprep.subr.bf16.mxu0 0
    %200 = vmatpush1.bf16.xpose.msra.mxu0 %v172
    %201 = vmatprep.subr.bf16.mxu0 0
    %202 = vmatpush1.bf16.xpose.msra.mxu0 %v169
    %203 = vmatprep.subr.bf16.mxu0 0
    %204 = vmatpush1.bf16.xpose.msra.mxu0 %v166
    %205 = vmatprep.subr.bf16.mxu0 0
    %206 = vmatpush2.bf16.xpose.msra.mxu0 0
    %207 = vmatprep.subr.bf16.mxu0 0
    %208 = vmatpush2.bf16.xpose.msra.mxu0 0
    %209 = vmatprep.subr.bf16.mxu0 0
    %210 = vmatpush2.bf16.xpose.msra.mxu0 0
    %211 = vmatprep.subr.bf16.mxu0 0
    %212 = vmatpush2.bf16.xpose.msra.mxu0 0
    %213 = vmatprep.subr.bf16.mxu0 0
    %214 = vmatpush2.bf16.xpose.msra.mxu0 0
    %215 = vmatprep.subr.bf16.mxu0 0
    %216 = vmatpush2.bf16.xpose.msra.mxu0 0
    %217 = vmatprep.subr.bf16.mxu0 0
    %218 = vmatpush2.bf16.xpose.msra.mxu0 0
    %219 = vmatprep.subr.bf16.mxu0 0
    %220 = vmatpush2.bf16.xpose.msra.mxu0 0
    %221 = vmatprep.mubr.bf16.mxu0 0
    %222 = vmatmul.mubr.bf16.gmra.mxu0 %v163
    %v223 = vpop.f32.mrf.mxu0
    %v224 = vadd.f32 0.0, %v223
    %v225 = vpop.f32.mrf.mxu0
    %v226 = vpop.f32.mrf.mxu0
    %v227 = vpop.f32.mrf.mxu0
    %228 = vdwg.mxu0
    %v229 = vlaneseq
    %v230 = vand.u32 %v229, 127
    %s231 = smul.u32 0, 128
    %v232 = vstv %s231
    %v233 = vadd.s32 %v230, %v232
    %v234 = vld [vmem:[%s2] sm:$0xff]
    %235 = vset.pattern.permute.xlu0 0
    %236 = vperm.xlu0 %235, %v234
    %v237 = vpop.permute.xlu0 %236
    %vm238 = vcmp.eq.s32.totalorder %v233, %v237
    %v239 = vsel %vm238, %v224, 0.0
    %240 = vadd.xlane.f32.xlu0 %v239
    %v241 = vpop.xlane.xlu0 %240
    %v242 = vmul.f32 %v241, %v241
    %v243 = vsub.f32 1.0, %v242
    %v244 = vmax.f32 %v243, 0.0
    %v245 = vmin.f32 %v244, 1.0
    %v246 = vrsqrt.pop %v245
    %v247 = vmul.f32 %v245, %v246
    %vm248 = vcmp.eq.f32.partialorder %v245, inf
    %v249 = vsel %vm248, %v245, %v247
    %vm250 = vcmp.eq.f32.partialorder %v245, 0.0
    %v251 = vand.u32 %v245, 2147483648
    %v252 = vsel %vm250, %v251, %v249
    %v253 = vmul.f32 %v241, 0.87758255
    %v254 = vmul.f32 %v252, 0.47942555
    %v255 = vsub.f32 %v253, %v254
    %vm256 = vcmp.gt.f32.partialorder %v241, -0.87758255
    %v257 = vsub.f32 %v241, 0.23971277
    %v258 = vsel %vm256, %v255, %v257
    %v259 = vsel %vm238, %v258, %v224
    %v260 = vmul.f32 %v259, 30.0
    %261 = vst [vmem:[#allocation2] sm:$0xff] %v260
    // Predicated region
    $region14: #{tpu_custom_call.1} parent=1 // pred_check
      _
    $region15: #{tpu_custom_call.1} parent=1 // pred_check_branch
      %263 = sbr.rel (0) target = $region17
    $region16: #{tpu_custom_call.1} parent=1 // pred_region
      %s265 = ssub.s32 128, 128
      %266 = vsyncadd [#allocation3], %s265
      %s268 = sshll.u32 [#allocation2], 4
      %s269 = int_to_ptr.vmem [resolvable:$true] %s268
      %271 = dma.vmem_to_hbm [thread:$0]  %s269, 128, %s3, [#allocation3]
    $region17: #{tpu_custom_call.1} parent=1 // pred_fallthru
      _
    // Predicated region
    $region18: #{tpu_custom_call.1} parent=1 // pred_check
      _
    $region19: #{tpu_custom_call.1} parent=1 // pred_check_branch
      %273 = sbr.rel (0) target = $region21
    $region20: #{tpu_custom_call.1} parent=1 // pred_region
      %274 = dma.done [#allocation3], 128
    $region21: #{tpu_custom_call.1} parent=1 // pred_fallthru
      _
    %275 = vsyncpa [#allocation3], 1

</llo_original>
